<compile_context>
chip_gen: v5e
topology: v5e:2x2
jax: 0.10.0
libtpu: 0.0.40
codegen_flags: <defaults>
</compile_context>

<pallas_src>
import jax
import jax.numpy as jnp
from jax.experimental import pallas as pl
from jax.experimental.pallas import tpu as pltpu


def _modulate_kernel(scale_ref, shift_ref, x_ref, o_ref):
    # scale/shift are (N*C, 1) and resident across the whole grid (their
    # index_map is constant), so they are loaded once and broadcast across
    # the lane (spatial) axis of each tile.  Hot path per vreg: vld+vmul+vadd+vst.
    o_ref[...] = x_ref[...] * scale_ref[...] + shift_ref[...]


def apply_style_pallas(x, latent, weight, bias, *, gain=1.0, lrmul=1.0,
                       use_wscale=True):
    """x: (N, C, D, H, W) f32, latent: (N, L) f32,
       weight: (2C, L) f32 (PyTorch layout: out x in), bias: (2C,) f32."""
    N, C, D, H, W = x.shape
    L = latent.shape[1]
    S = D * H * W
    NC = N * C

    # ---- Style FC (hoisted out of the kernel; tiny, lane-dense XLA matmul) ----
    # Equalized-LR ("wscale") multipliers, identical to the StyleGAN FC.
    he_std = gain * (L ** -0.5)
    w_mul = float(he_std * lrmul) if use_wscale else float(lrmul)
    b_mul = float(lrmul)

    style = latent @ (weight.T * w_mul) + bias * b_mul              # (N, 2C)
    style = jnp.where(style >= 0.0, style, 0.2 * style)             # leaky_relu(0.2)
    scale = (style[:, :C] + 1.0).reshape(NC, 1).astype(jnp.float32)  # (N*C, 1)
    shift = style[:, C:].reshape(NC, 1).astype(jnp.float32)          # (N*C, 1)

    # ---- Layout: collapse (N, C) -> sublanes, S -> lanes; pad S to 128 ----
    x_flat = x.reshape(NC, S).astype(jnp.float32)

    itemsize = 4  # f32
    # VMEM budget for the pipelined buffers (2x in + 2x out double-buffered),
    # kept conservative so it fits every generation (v7x has only 64 MiB).
    budget = 16 * 1024 * 1024
    ts_cap = max(128, (budget // (4 * NC * itemsize)) // 128 * 128)
    ts_cap = min(ts_cap, 2048)          # 512-2048 lane tiles hit ~85% HBM roofline

    s_pad128 = -(-S // 128) * 128       # lane-dense: multiple of 128
    TS = min(ts_cap, s_pad128)
    S_pad = -(-s_pad128 // TS) * TS

    if S_pad != S:
        x_flat = jnp.pad(x_flat, ((0, 0), (0, S_pad - S)))

    n_tiles = S_pad // TS

    out_flat = pl.pallas_call(
        _modulate_kernel,
        out_shape=jax.ShapeDtypeStruct((NC, S_pad), jnp.float32),
        grid=(n_tiles,),
        in_specs=[
            pl.BlockSpec((NC, 1), lambda s: (0, 0)),     # scale (resident)
            pl.BlockSpec((NC, 1), lambda s: (0, 0)),     # shift (resident)
            pl.BlockSpec((NC, TS), lambda s: (0, s)),    # x spatial tile
        ],
        out_specs=pl.BlockSpec((NC, TS), lambda s: (0, s)),
        compiler_params=pltpu.CompilerParams(
            dimension_semantics=("parallel",),
            vmem_limit_bytes=48 * 1024 * 1024,
        ),
    )(scale, shift, x_flat)

    out = out_flat[:, :S].reshape(N, C, D, H, W)
    return out.astype(x.dtype)


def apply_style_reference(x, latent, weight, bias, *, gain=1.0, lrmul=1.0,
                          use_wscale=True):
    """Pure-JAX reference mirroring the PyTorch module."""
    N, C, D, H, W = x.shape
    L = latent.shape[1]
    he_std = gain * (L ** -0.5)
    w_mul = he_std * lrmul if use_wscale else lrmul
    b_mul = lrmul
    style = latent @ (weight * w_mul).T + bias * b_mul              # (N, 2C)
    style = jnp.where(style >= 0.0, style, 0.2 * style)             # leaky_relu(0.2)
    style = style.reshape(N, 2, C, 1, 1, 1)
    return x * (style[:, 0] + 1.0) + style[:, 1]


if __name__ == "__main__":
    # Small shapes consistent with the module: batch=2, channels=16,
    # latent_size=32, spatial (D, H, W) = (4, 8, 8).
    N, C, L = 2, 16, 32
    D, H, W = 4, 8, 8

    key = jax.random.PRNGKey(0)
    kx, kl, kw = jax.random.split(key, 3)

    x = jax.random.normal(kx, (N, C, D, H, W), dtype=jnp.float32)
    latent = jax.random.normal(kl, (N, L), dtype=jnp.float32)

    # Deterministic parameter init matching FC(__init__) with use_wscale=True:
    # weight ~ N(0, 1) (init_std = 1/lrmul = 1), bias = zeros.
    weight = jax.random.normal(kw, (2 * C, L), dtype=jnp.float32)
    bias = jnp.zeros((2 * C,), dtype=jnp.float32)

    out = apply_style_pallas(x, latent, weight, bias)
    out = jax.block_until_ready(out)

    ref = apply_style_reference(x, latent, weight, bias)
    assert out.shape == (N, C, D, H, W)
    assert jnp.allclose(out, ref, atol=1e-4, rtol=1e-4), "mismatch vs reference"

    print("KERNEL_OK")
</pallas_src>

<mosaic_0001>
module attributes {stable_mosaic.version = 11 : i64} {
  func.func @_modulate_kernel(%arg0: i32, %arg1: memref<32x1xf32, #tpu.memory_space<vmem>>, %arg2: memref<32x1xf32, #tpu.memory_space<vmem>>, %arg3: memref<32x256xf32, #tpu.memory_space<vmem>>, %arg4: memref<32x256xf32, #tpu.memory_space<vmem>>) attributes {dimension_semantics = [#tpu.dimension_semantics<parallel>], iteration_bounds = array<i64: 1>, scalar_prefetch = 0 : i64, scratch_operands = 0 : i64, tpu.core_type = #tpu.core_type<tc>, window_params = [{pipeline_mode = #tpu.pipeline_mode<synchronous>, transform_indices = @transform_0, window_bounds = array<i64: 32, 1>}, {pipeline_mode = #tpu.pipeline_mode<synchronous>, transform_indices = @transform_1, window_bounds = array<i64: 32, 1>}, {transform_indices = @transform_2, window_bounds = array<i64: 32, 256>}, {transform_indices = @transform_3, window_bounds = array<i64: 32, 256>}]} {
    %c0 = arith.constant 0 : index
    %c0_0 = arith.constant 0 : index
    %0 = vector.load %arg3[%c0, %c0_0] : memref<32x256xf32, #tpu.memory_space<vmem>>, vector<32x256xf32>
    %c0_1 = arith.constant 0 : index
    %c0_2 = arith.constant 0 : index
    %1 = vector.load %arg1[%c0_1, %c0_2] : memref<32x1xf32, #tpu.memory_space<vmem>>, vector<32x1xf32>
    %2 = vector.broadcast %1 : vector<32x1xf32> to vector<32x256xf32>
    %3 = arith.mulf %0, %2 : vector<32x256xf32>
    %c0_3 = arith.constant 0 : index
    %c0_4 = arith.constant 0 : index
    %4 = vector.load %arg2[%c0_3, %c0_4] : memref<32x1xf32, #tpu.memory_space<vmem>>, vector<32x1xf32>
    %5 = vector.broadcast %4 : vector<32x1xf32> to vector<32x256xf32>
    %6 = arith.addf %3, %5 : vector<32x256xf32>
    %c0_5 = arith.constant 0 : index
    %c0_6 = arith.constant 0 : index
    %7 = vector.load %arg4[%c0_5, %c0_6] : memref<32x256xf32, #tpu.memory_space<vmem>>, vector<32x256xf32>
    tpu.vector_store %arg4[%c0_5, %c0_6], %6 {strides = array<i32>} : memref<32x256xf32, #tpu.memory_space<vmem>>, vector<32x256xf32>,
    return
  }
  func.func @transform_0(%arg0: i32) -> (i32, i32) {
    %c0_i32 = arith.constant 0 : i32
    %c0_i32_0 = arith.constant 0 : i32
    %c0_i32_1 = arith.constant 0 : i32
    return %c0_i32, %c0_i32_0 : i32, i32
  }
  func.func @transform_1(%arg0: i32) -> (i32, i32) {
    %c0_i32 = arith.constant 0 : i32
    %c0_i32_0 = arith.constant 0 : i32
    %c0_i32_1 = arith.constant 0 : i32
    return %c0_i32, %c0_i32_0 : i32, i32
  }
  func.func @transform_2(%arg0: i32) -> (i32, i32) {
    %c0_i32 = arith.constant 0 : i32
    %c0_i32_0 = arith.constant 0 : i32
    return %c0_i32, %arg0 : i32, i32
  }
  func.func @transform_3(%arg0: i32) -> (i32, i32) {
    %c0_i32 = arith.constant 0 : i32
    %c0_i32_0 = arith.constant 0 : i32
    return %c0_i32, %arg0 : i32, i32
  }
}

</mosaic_0001>

<llo_original>
// kernel: tpu_custom_call.1
$region0: #{tpu_custom_call.1}
  #allocation0 [shape = 'u32[]', space=smem, size = 0x4, offset = 0x4, fixed_abs, tag = 'smem constant byte address 0x4 - core index']
  #allocation1 [shape = 'u32[72,128]{1,0:T(1,128)}', space=vmem, size = 0x9000, scoped, tag = 'internal scratch']
  %s0 = inlined_call_operand.vmem [shape: f32[32,1], index: 0, kind: input, shape index: {}]
  %s1 = inlined_call_operand.vmem [shape: f32[32,1], index: 1, kind: input, shape index: {}]
  %s2 = inlined_call_operand.vmem [shape: f32[32,256], index: 2, kind: input, shape index: {}]
  %s3 = inlined_call_operand.hbm [shape: f32[32,256], index: 3, kind: output, shape index: {}]
  %s4 = sld [smem:[#allocation0]]
  $region22: #{tpu_custom_call.1} parent=0
    _
  %s6 = ssub.s32 1, %s4
  %s7 = scalar_select 0, %s6, %s4
  $region1: #{tpu_custom_call.1} parent=0
    #allocation2 [shape = 'u8[32768]{0}', space=vmem, size = 0x8000, scoped, tag = 'output window, operand 0, single buffered']
    #allocation3 [shape = 's32[1]{0}', space=sflag, size = 0x4, scoped, tag = 'scoped memory for tpu_custom_call.1']
    %8 = vsyncpa [#allocation3], 0
    // Predicated region
    $region2: #{tpu_custom_call.1} parent=1 // pred_check
      _
    $region3: #{tpu_custom_call.1} parent=1 // pred_check_branch
      %10 = sbr.rel (0) target = $region5
    $region4: #{tpu_custom_call.1} parent=1 // pred_region
      _
    $region5: #{tpu_custom_call.1} parent=1 // pred_fallthru
      _
    // Predicated region
    $region6: #{tpu_custom_call.1} parent=1 // pred_check
      _
    $region7: #{tpu_custom_call.1} parent=1 // pred_check_branch
      %12 = sbr.rel (0) target = $region9
    $region8: #{tpu_custom_call.1} parent=1 // pred_region
      _
    $region9: #{tpu_custom_call.1} parent=1 // pred_fallthru
      _
    // Predicated region
    $region10: #{tpu_custom_call.1} parent=1 // pred_check
      _
    $region11: #{tpu_custom_call.1} parent=1 // pred_check_branch
      %14 = sbr.rel (0) target = $region13
    $region12: #{tpu_custom_call.1} parent=1 // pred_region
      _
    $region13: #{tpu_custom_call.1} parent=1 // pred_fallthru
      _
    %v15 = vld [vmem:[%s2] sm:$0xff]
    %v16 = vld [vmem:[%s2 + $0x8] sm:$0xff]
    %v17 = vld [vmem:[%s2 + $0x10] sm:$0xff]
    %v18 = vld [vmem:[%s2 + $0x18] sm:$0xff]
    %v19 = vld [vmem:[%s2 + $0x20] sm:$0xff]
    %v20 = vld [vmem:[%s2 + $0x28] sm:$0xff]
    %v21 = vld [vmem:[%s2 + $0x30] sm:$0xff]
    %v22 = vld [vmem:[%s2 + $0x38] sm:$0xff]
    %v23 = vld [vmem:[%s0] sm:$0xff]
    %v24 = vld [vmem:[%s0 + $0x8] sm:$0xff]
    %v25 = vld [vmem:[%s0 + $0x10] sm:$0xff]
    %v26 = vld [vmem:[%s0 + $0x18] sm:$0xff]
    %28 = vset.pattern.permute.xlu0 0
    %29 = vperm.xlu0 %28, %v23
    %v30 = vpop.permute.xlu0 %29
    %33 = vset.pattern.permute.xlu0 0
    %34 = vperm.xlu0 %33, %v24
    %v35 = vpop.permute.xlu0 %34
    %38 = vset.pattern.permute.xlu0 0
    %39 = vperm.xlu0 %38, %v25
    %v40 = vpop.permute.xlu0 %39
    %43 = vset.pattern.permute.xlu0 0
    %44 = vperm.xlu0 %43, %v26
    %v45 = vpop.permute.xlu0 %44
    %v47 = vmul.f32 %v15, %v30
    %v48 = vmul.f32 %v16, %v30
    %v49 = vmul.f32 %v17, %v35
    %v50 = vmul.f32 %v18, %v35
    %v51 = vmul.f32 %v19, %v40
    %v52 = vmul.f32 %v20, %v40
    %v53 = vmul.f32 %v21, %v45
    %v54 = vmul.f32 %v22, %v45
    %v55 = vld [vmem:[%s1] sm:$0xff]
    %v56 = vld [vmem:[%s1 + $0x8] sm:$0xff]
    %v57 = vld [vmem:[%s1 + $0x10] sm:$0xff]
    %v58 = vld [vmem:[%s1 + $0x18] sm:$0xff]
    %60 = vset.pattern.permute.xlu0 0
    %61 = vperm.xlu0 %60, %v55
    %v62 = vpop.permute.xlu0 %61
    %65 = vset.pattern.permute.xlu0 0
    %66 = vperm.xlu0 %65, %v56
    %v67 = vpop.permute.xlu0 %66
    %70 = vset.pattern.permute.xlu0 0
    %71 = vperm.xlu0 %70, %v57
    %v72 = vpop.permute.xlu0 %71
    %75 = vset.pattern.permute.xlu0 0
    %76 = vperm.xlu0 %75, %v58
    %v77 = vpop.permute.xlu0 %76
    %v79 = vadd.f32 %v47, %v62
    %v80 = vadd.f32 %v48, %v62
    %v81 = vadd.f32 %v49, %v67
    %v82 = vadd.f32 %v50, %v67
    %v83 = vadd.f32 %v51, %v72
    %v84 = vadd.f32 %v52, %v72
    %v85 = vadd.f32 %v53, %v77
    %v86 = vadd.f32 %v54, %v77
    %87 = vst [vmem:[#allocation2] sm:$0xff] %v79
    %88 = vst [vmem:[#allocation2 + $0x8] sm:$0xff] %v80
    %89 = vst [vmem:[#allocation2 + $0x10] sm:$0xff] %v81
    %90 = vst [vmem:[#allocation2 + $0x18] sm:$0xff] %v82
    %91 = vst [vmem:[#allocation2 + $0x20] sm:$0xff] %v83
    %92 = vst [vmem:[#allocation2 + $0x28] sm:$0xff] %v84
    %93 = vst [vmem:[#allocation2 + $0x30] sm:$0xff] %v85
    %94 = vst [vmem:[#allocation2 + $0x38] sm:$0xff] %v86
    // Predicated region
    $region14: #{tpu_custom_call.1} parent=1 // pred_check
      _
    $region15: #{tpu_custom_call.1} parent=1 // pred_check_branch
      %96 = sbr.rel (0) target = $region17
    $region16: #{tpu_custom_call.1} parent=1 // pred_region
      %98 = vsyncadd [#allocation3], 0
      %s99 = sshll.u32 [#allocation2], 4
      %s100 = int_to_ptr.vmem [resolvable:$true] %s99
      %s101 = sshll.u32 %s3, 4
      %s102 = int_to_ptr.hbm [resolvable:$true] %s101
      %107 = dma.vmem_to_hbm [thread:$0]  %s100, 1024, %s102, [#allocation3], 256, 256, 16
    $region17: #{tpu_custom_call.1} parent=1 // pred_fallthru
      _
    // Predicated region
    $region18: #{tpu_custom_call.1} parent=1 // pred_check
      _
    $region19: #{tpu_custom_call.1} parent=1 // pred_check_branch
      %109 = sbr.rel (0) target = $region21
    $region20: #{tpu_custom_call.1} parent=1 // pred_region
      %111 = dma.done [#allocation3], 1024
    $region21: #{tpu_custom_call.1} parent=1 // pred_fallthru
      _
    %112 = vsyncpa [#allocation3], 1

</llo_original>
